<compile_context>
chip_gen: v7x
topology: tpu7x:2x2x1
jax: 0.10.0
libtpu: 0.0.40
codegen_flags: <defaults>
</compile_context>

<pallas_src>
import functools

import jax
import jax.numpy as jnp
import numpy as np
from jax import lax
from jax.experimental import pallas as pl
from jax.experimental.pallas import tpu as pltpu


def _round_up(v, m):
    return (v + m - 1) // m * m


# ---------------------------------------------------------------------------
# Pass 1: masked conv + sparsity count (K accumulated padded MXU matmuls),
# sparse normalization + bias, mask max-pool, per-step partial BN statistics.
# ---------------------------------------------------------------------------
def _conv_count_kernel(x_ref, m_ref, w_ref, b_ref,
                       ypre_ref, mpool_ref, stats_ref,
                       a_scr, mpad_scr,
                       *, ksize, cin, height, width, batch_tile):
    K = ksize
    p = K // 2
    H, W = height, width
    Wp = W + 2 * p
    nco = w_ref.shape[-1] // 2        # padded (w, cout) lane width (>= 128)

    # Zero the padded scratch every step (cheap at this size) so the batch
    # grid axis is safe to run "parallel" across TensorCores.
    a_scr[...] = jnp.zeros_like(a_scr)
    mpad_scr[...] = jnp.zeros_like(mpad_scr)

    # Fill the interior of the padded, channel-blocked activation plane:
    #   a_scr[b, hp, c*Wp + wp] = (x*mask | mask)_zero_padded[hp, wp, c]
    for tb in range(batch_tile):
        msk = m_ref[tb, 0]                                   # (H, W) f32
        for ci in range(cin):
            xm = x_ref[tb, ci] * msk                         # (H, W) f32
            s = ci * Wp + p
            a_scr[tb, p:p + H, s:s + W] = xm
        s = cin * Wp + p
        a_scr[tb, p:p + H, s:s + W] = msk
        mpad_scr[tb, p:p + H, p:p + W] = msk

    stat_sum = jnp.zeros((1, nco), jnp.float32)
    stat_sq = jnp.zeros((1, nco), jnp.float32)

    for tb in range(batch_tile):
        # Conv + count in one accumulated matmul chain (bf16 operands, f32
        # accumulation).  The weight's N axis is
        #   [(w, cout) conv block | (w, cout) count block]
        # so the result is already in the lane-dense (H, W*Cout) layout.
        res = jnp.zeros((H, 2 * nco), jnp.float32)
        for dy in range(K):
            lhs = a_scr[tb, dy:dy + H, :].astype(jnp.bfloat16)   # (H, 128)
            res = res + jnp.dot(lhs, w_ref[dy],
                                preferred_element_type=jnp.float32)
        conv = res[:, :nco]
        cnt = res[:, nco:]

        # Sparse normalizer (approx EUP reciprocal) + learned bias, f32 math.
        y = conv * pl.reciprocal(cnt + 1e-8, approx=True) + b_ref[...]
        ypre_ref[tb] = y.astype(ypre_ref.dtype)              # lane-dense bf16

        # Partial BN statistics for this grid step (per-(w,cout) lane sums;
        # the wrapper reduces over steps and w).
        stat_sum = stat_sum + jnp.sum(y, axis=0, keepdims=True)
        stat_sq = stat_sq + jnp.sum(y * y, axis=0, keepdims=True)

        # MaxPool2d(K, stride=1, pad=K//2) on the mask.  Zero padding equals
        # the reference's -inf padding because the mask is non-negative and
        # every 'same' window contains at least one in-bounds pixel.
        mp = mpad_scr[tb, 0:H, 0:W]
        for t in range(1, K * K):
            dy, dx = t // K, t % K
            mp = jnp.maximum(mp, mpad_scr[tb, dy:dy + H, dx:dx + W])
        mpool_ref[tb] = mp

    stats_ref[...] = jnp.concatenate([stat_sum, stat_sq],
                                     axis=0).reshape(1, 2, nco)


# ---------------------------------------------------------------------------
# Pass 2: BatchNorm affine + ReLU on lane-dense (rows, W*Cout) tiles.
# ---------------------------------------------------------------------------
def _bn_act_kernel(y_ref, a_ref, o_ref, *, active_fn):
    y = y_ref[...].astype(jnp.float32) * a_ref[0:1, :] + a_ref[1:2, :]
    if active_fn:
        y = jnp.maximum(y, 0.0)
    o_ref[...] = y


# ---------------------------------------------------------------------------
# Wrapper: PyTorch-compatible NCHW in / NCHW out.
# ---------------------------------------------------------------------------
def sparse_conv_forward(x, mask, w_oihw, bias, gamma, beta,
                        *, ksize=3, active_fn=True, batch_tile=None):
    x = x.astype(jnp.float32)
    mask = mask.astype(jnp.float32)
    B, Cin, H, W = x.shape
    Cout = w_oihw.shape[0]
    K = ksize
    p = K // 2
    C = Cin + 1
    Wp = W + 2 * p
    Hp = H + 2 * p
    cwp_pad = _round_up(C * Wp, 128)       # matmul contraction width
    wco = W * Cout
    nco = _round_up(wco, 128)              # lane-dense (w, cout) width

    # Batch tile: keep >= 2 grid steps when possible so the "parallel" batch
    # axis can shard across v7x's two TensorCores.
    if batch_tile is None:
        batch_tile = 1
        for cand in range(min(8, B), 0, -1):
            if B % cand == 0 and B // cand >= 2:
                batch_tile = cand
                break
    assert B % batch_tile == 0
    nsteps = B // batch_tile

    # Fused conv + count weight (built once from concrete module parameters).
    # Rows: (channel block c, padded column wp), zero-padded to cwp_pad.
    # Cols: [(w,cout) conv | (w,cout) count], each zero-padded to nco ->
    # both matmul dims are 128-aligned (zero rows/cols are free on the MXU).
    w_np = np.asarray(jax.device_get(w_oihw), np.float32)      # (Cout,Cin,K,K)
    wmat = np.zeros((K, cwp_pad, 2 * nco), np.float32)
    for dy in range(K):
        for dx in range(K):
            for wi in range(W):
                row = wi + dx
                col = wi * Cout
                for ci in range(Cin):
                    wmat[dy, ci * Wp + row, col:col + Cout] = w_np[:, ci, dy, dx]
                wmat[dy, Cin * Wp + row, nco + col:nco + col + Cout] = 1.0
    wmat = jnp.asarray(wmat, jnp.bfloat16)

    bias_np = np.asarray(jax.device_get(bias), np.float32)
    blane = np.zeros((1, nco), np.float32)
    blane[0, :wco] = np.tile(bias_np, W)
    blane = jnp.asarray(blane)

    kernel1 = functools.partial(_conv_count_kernel, ksize=K, cin=Cin,
                                height=H, width=W, batch_tile=batch_tile)
    cost1 = pl.CostEstimate(
        flops=2 * B * K * H * cwp_pad * 2 * nco,
        transcendentals=B * H * nco,
        bytes_accessed=4 * (x.size + mask.size + B * H * W + nsteps * 2 * nco)
        + 2 * (B * H * nco + wmat.size))

    ypre, mpool, stats = pl.pallas_call(
        kernel1,
        out_shape=(jax.ShapeDtypeStruct((B, H, nco), jnp.bfloat16),
                   jax.ShapeDtypeStruct((B, H, W), jnp.float32),
                   jax.ShapeDtypeStruct((nsteps, 2, nco), jnp.float32)),
        grid=(nsteps,),
        in_specs=[
            pl.BlockSpec((batch_tile, Cin, H, W), lambda i: (i, 0, 0, 0)),
            pl.BlockSpec((batch_tile, 1, H, W), lambda i: (i, 0, 0, 0)),
            pl.BlockSpec((K, cwp_pad, 2 * nco), lambda i: (0, 0, 0)),
            pl.BlockSpec((1, nco), lambda i: (0, 0)),
        ],
        out_specs=(
            pl.BlockSpec((batch_tile, H, nco), lambda i: (i, 0, 0)),
            pl.BlockSpec((batch_tile, H, W), lambda i: (i, 0, 0)),
            pl.BlockSpec((1, 2, nco), lambda i: (i, 0, 0)),
        ),
        scratch_shapes=[
            pltpu.VMEM((batch_tile, Hp, cwp_pad), jnp.float32),   # padded x|mask
            pltpu.VMEM((batch_tile, Hp, Wp), jnp.float32),        # padded mask
        ],
        compiler_params=pltpu.CompilerParams(
            dimension_semantics=("parallel",)),
        cost_estimate=cost1,
    )(x, mask, wmat, blane)

    # BatchNorm2d (training mode, biased variance) from the per-step partial
    # sums: O(nsteps * W * Cout) glue math.
    # TODO(synk): running_mean/running_var buffer updates are not produced.
    tot = jnp.sum(stats[:, :, :wco].reshape(nsteps, 2, W, Cout), axis=(0, 2))
    n = float(B * H * W)
    mean = tot[0] / n
    var = jnp.maximum(tot[1] / n - mean * mean, 0.0)
    scale = gamma.astype(jnp.float32) * lax.rsqrt(var + 1e-5)
    shift = beta.astype(jnp.float32) - mean * scale
    pad = nco - wco
    affine = jnp.stack([jnp.pad(jnp.tile(scale, W), (0, pad)),
                        jnp.pad(jnp.tile(shift, W), (0, pad))], axis=0)

    # Pass 2: BN affine + ReLU over row tiles of the lane-dense (B*H, nco) slab.
    bh = B * H
    tr = bh
    if bh > 1024:
        for cand in range(1024, 7, -8):
            if bh % cand == 0:
                tr = cand
                break
    kernel2 = functools.partial(_bn_act_kernel, active_fn=active_fn)
    out2 = pl.pallas_call(
        kernel2,
        out_shape=jax.ShapeDtypeStruct((bh, nco), jnp.float32),
        grid=(bh // tr,),
        in_specs=[pl.BlockSpec((tr, nco), lambda i: (i, 0)),
                  pl.BlockSpec((2, nco), lambda i: (0, 0))],
        out_specs=pl.BlockSpec((tr, nco), lambda i: (i, 0)),
        compiler_params=pltpu.CompilerParams(
            dimension_semantics=("parallel",)),
    )(ypre.reshape(bh, nco), affine)

    out = out2.reshape(B, H, nco)[:, :, :wco].reshape(B, H, W, Cout)
    out = jnp.transpose(out, (0, 3, 1, 2))
    return out, mpool.reshape(B, 1, H, W)


# ---------------------------------------------------------------------------
# Pure-JAX reference (NCHW), mirroring the PyTorch forward exactly.
# ---------------------------------------------------------------------------
def sparse_conv_reference(x, mask, w_oihw, bias, gamma, beta,
                          *, ksize, active_fn):
    p = ksize // 2
    dn = ('NCHW', 'OIHW', 'NCHW')
    xm = x * mask
    y = lax.conv_general_dilated(xm, w_oihw, (1, 1), [(p, p), (p, p)],
                                 dimension_numbers=dn)
    ones = jnp.ones((1, 1, ksize, ksize), x.dtype)
    cnt = lax.conv_general_dilated(mask, ones, (1, 1), [(p, p), (p, p)],
                                   dimension_numbers=dn)
    y = y * (1.0 / (cnt + 1e-8)) + bias[None, :, None, None]
    mean = jnp.mean(y, axis=(0, 2, 3), keepdims=True)
    var = jnp.mean((y - mean) ** 2, axis=(0, 2, 3), keepdims=True)
    y = (y - mean) * (gamma[None, :, None, None] * lax.rsqrt(var + 1e-5)) \
        + beta[None, :, None, None]
    if active_fn:
        y = jnp.maximum(y, 0.0)
    mpool = lax.reduce_window(mask, -jnp.inf, lax.max,
                              (1, 1, ksize, ksize), (1, 1, 1, 1),
                              [(0, 0), (0, 0), (p, p), (p, p)])
    return y, mpool


if __name__ == "__main__":
    key = jax.random.PRNGKey(0)
    k1, k2, k3, k4, k5, k6 = jax.random.split(key, 6)

    B, Cin, H, W = 2, 4, 16, 16
    Cout, ksize = 8, 3
    active_fn = True

    x = jax.random.normal(k1, (B, Cin, H, W), jnp.float32)
    mask = (jax.random.uniform(k2, (B, 1, H, W)) > 0.4).astype(jnp.float32)
    w = 0.1 * jax.random.normal(k3, (Cout, Cin, ksize, ksize), jnp.float32)
    bias = 0.1 * jax.random.normal(k4, (Cout,), jnp.float32)
    gamma = 1.0 + 0.1 * jax.random.normal(k5, (Cout,), jnp.float32)
    beta = 0.1 * jax.random.normal(k6, (Cout,), jnp.float32)

    out, mask_out = sparse_conv_forward(x, mask, w, bias, gamma, beta,
                                        ksize=ksize, active_fn=active_fn)
    jax.block_until_ready((out, mask_out))

    ref_out, ref_mask = sparse_conv_reference(x, mask, w, bias, gamma, beta,
                                              ksize=ksize, active_fn=active_fn)
    assert out.shape == (B, Cout, H, W)
    assert mask_out.shape == (B, 1, H, W)
    # bf16 MXU operands + approx EUP reciprocal + bf16 intermediate -> loose tol.
    np.testing.assert_allclose(np.asarray(out), np.asarray(ref_out),
                               rtol=5e-2, atol=5e-2)
    np.testing.assert_allclose(np.asarray(mask_out), np.asarray(ref_mask),
                               rtol=1e-6, atol=1e-6)
    print("KERNEL_OK")
</pallas_src>

<mosaic_0001>
module attributes {stable_mosaic.version = 11 : i64} {
  func.func @_conv_count_kernel(%arg0: i32, %arg1: memref<1x4x16x16xf32, #tpu.memory_space<vmem>>, %arg2: memref<1x1x16x16xf32, #tpu.memory_space<vmem>>, %arg3: memref<3x128x256xbf16, #tpu.memory_space<vmem>>, %arg4: memref<1x128xf32, #tpu.memory_space<vmem>>, %arg5: memref<1x16x128xbf16, #tpu.memory_space<vmem>>, %arg6: memref<1x16x16xf32, #tpu.memory_space<vmem>>, %arg7: memref<1x2x128xf32, #tpu.memory_space<vmem>>, %arg8: memref<1x18x128xf32, #tpu.memory_space<vmem>>, %arg9: memref<1x18x18xf32, #tpu.memory_space<vmem>>) attributes {dimension_semantics = [#tpu.dimension_semantics<parallel>], iteration_bounds = array<i64: 2>, scalar_prefetch = 0 : i64, scratch_operands = 2 : i64, tpu.core_type = #tpu.core_type<tc>, window_params = [{transform_indices = @transform_0, window_bounds = array<i64: 1, 4, 16, 16>}, {transform_indices = @transform_1, window_bounds = array<i64: 1, 1, 16, 16>}, {pipeline_mode = #tpu.pipeline_mode<synchronous>, transform_indices = @transform_2, window_bounds = array<i64: 3, 128, 256>}, {pipeline_mode = #tpu.pipeline_mode<synchronous>, transform_indices = @transform_3, window_bounds = array<i64: 1, 128>}, {transform_indices = @transform_4, window_bounds = array<i64: 1, 16, 128>}, {transform_indices = @transform_5, window_bounds = array<i64: 1, 16, 16>}, {transform_indices = @transform_6, window_bounds = array<i64: 1, 2, 128>}]} {
    %cst = arith.constant 0.000000e+00 : f32
    %0 = vector.broadcast %cst : f32 to vector<1x18x128xf32>
    %c0 = arith.constant 0 : index
    %c0_0 = arith.constant 0 : index
    %c0_1 = arith.constant 0 : index
    %1 = vector.load %arg8[%c0, %c0_0, %c0_1] : memref<1x18x128xf32, #tpu.memory_space<vmem>>, vector<1x18x128xf32>
    tpu.vector_store %arg8[%c0, %c0_0, %c0_1], %0 {strides = array<i32>} : memref<1x18x128xf32, #tpu.memory_space<vmem>>, vector<1x18x128xf32>,
    %cst_2 = arith.constant 0.000000e+00 : f32
    %2 = vector.broadcast %cst_2 : f32 to vector<1x18x18xf32>
    %c0_3 = arith.constant 0 : index
    %c0_4 = arith.constant 0 : index
    %c0_5 = arith.constant 0 : index
    %3 = vector.load %arg9[%c0_3, %c0_4, %c0_5] : memref<1x18x18xf32, #tpu.memory_space<vmem>>, vector<1x18x18xf32>
    tpu.vector_store %arg9[%c0_3, %c0_4, %c0_5], %2 {strides = array<i32>} : memref<1x18x18xf32, #tpu.memory_space<vmem>>, vector<1x18x18xf32>,
    %c0_6 = arith.constant 0 : index
    %c0_7 = arith.constant 0 : index
    %c0_8 = arith.constant 0 : index
    %c0_9 = arith.constant 0 : index
    %4 = vector.load %arg2[%c0_6, %c0_7, %c0_8, %c0_9] : memref<1x1x16x16xf32, #tpu.memory_space<vmem>>, vector<1x1x16x16xf32>
    %5 = vector.shape_cast %4 : vector<1x1x16x16xf32> to vector<16x16xf32>
    %c0_10 = arith.constant 0 : index
    %c0_11 = arith.constant 0 : index
    %c0_12 = arith.constant 0 : index
    %c0_13 = arith.constant 0 : index
    %6 = vector.load %arg1[%c0_10, %c0_11, %c0_12, %c0_13] : memref<1x4x16x16xf32, #tpu.memory_space<vmem>>, vector<1x1x16x16xf32>
    %7 = vector.shape_cast %6 : vector<1x1x16x16xf32> to vector<16x16xf32>
    %8 = arith.mulf %7, %5 : vector<16x16xf32>
    %c0_14 = arith.constant 0 : index
    %c1 = arith.constant 1 : index
    %c1_15 = arith.constant 1 : index
    %9 = vector.load %arg8[%c0_14, %c1, %c1_15] : memref<1x18x128xf32, #tpu.memory_space<vmem>>, vector<1x16x16xf32>
    %10 = vector.shape_cast %9 : vector<1x16x16xf32> to vector<16x16xf32>
    %11 = vector.shape_cast %8 : vector<16x16xf32> to vector<1x16x16xf32>
    tpu.vector_store %arg8[%c0_14, %c1, %c1_15], %11 {strides = array<i32>} : memref<1x18x128xf32, #tpu.memory_space<vmem>>, vector<1x16x16xf32>,
    %c0_16 = arith.constant 0 : index
    %c1_17 = arith.constant 1 : index
    %c0_18 = arith.constant 0 : index
    %c0_19 = arith.constant 0 : index
    %12 = vector.load %arg1[%c0_16, %c1_17, %c0_18, %c0_19] : memref<1x4x16x16xf32, #tpu.memory_space<vmem>>, vector<1x1x16x16xf32>
    %13 = vector.shape_cast %12 : vector<1x1x16x16xf32> to vector<16x16xf32>
    %14 = arith.mulf %13, %5 : vector<16x16xf32>
    %c0_20 = arith.constant 0 : index
    %c1_21 = arith.constant 1 : index
    %c19 = arith.constant 19 : index
    %15 = vector.load %arg8[%c0_20, %c1_21, %c19] : memref<1x18x128xf32, #tpu.memory_space<vmem>>, vector<1x16x16xf32>
    %16 = vector.shape_cast %15 : vector<1x16x16xf32> to vector<16x16xf32>
    %17 = vector.shape_cast %14 : vector<16x16xf32> to vector<1x16x16xf32>
    tpu.vector_store %arg8[%c0_20, %c1_21, %c19], %17 {strides = array<i32>} : memref<1x18x128xf32, #tpu.memory_space<vmem>>, vector<1x16x16xf32>,
    %c0_22 = arith.constant 0 : index
    %c2 = arith.constant 2 : index
    %c0_23 = arith.constant 0 : index
    %c0_24 = arith.constant 0 : index
    %18 = vector.load %arg1[%c0_22, %c2, %c0_23, %c0_24] : memref<1x4x16x16xf32, #tpu.memory_space<vmem>>, vector<1x1x16x16xf32>
    %19 = vector.shape_cast %18 : vector<1x1x16x16xf32> to vector<16x16xf32>
    %20 = arith.mulf %19, %5 : vector<16x16xf32>
    %c0_25 = arith.constant 0 : index
    %c1_26 = arith.constant 1 : index
    %c37 = arith.constant 37 : index
    %21 = vector.load %arg8[%c0_25, %c1_26, %c37] : memref<1x18x128xf32, #tpu.memory_space<vmem>>, vector<1x16x16xf32>
    %22 = vector.shape_cast %21 : vector<1x16x16xf32> to vector<16x16xf32>
    %23 = vector.shape_cast %20 : vector<16x16xf32> to vector<1x16x16xf32>
    tpu.vector_store %arg8[%c0_25, %c1_26, %c37], %23 {strides = array<i32>} : memref<1x18x128xf32, #tpu.memory_space<vmem>>, vector<1x16x16xf32>,
    %c0_27 = arith.constant 0 : index
    %c3 = arith.constant 3 : index
    %c0_28 = arith.constant 0 : index
    %c0_29 = arith.constant 0 : index
    %24 = vector.load %arg1[%c0_27, %c3, %c0_28, %c0_29] : memref<1x4x16x16xf32, #tpu.memory_space<vmem>>, vector<1x1x16x16xf32>
    %25 = vector.shape_cast %24 : vector<1x1x16x16xf32> to vector<16x16xf32>
    %26 = arith.mulf %25, %5 : vector<16x16xf32>
    %c0_30 = arith.constant 0 : index
    %c1_31 = arith.constant 1 : index
    %c55 = arith.constant 55 : index
    %27 = vector.load %arg8[%c0_30, %c1_31, %c55] : memref<1x18x128xf32, #tpu.memory_space<vmem>>, vector<1x16x16xf32>
    %28 = vector.shape_cast %27 : vector<1x16x16xf32> to vector<16x16xf32>
    %29 = vector.shape_cast %26 : vector<16x16xf32> to vector<1x16x16xf32>
    tpu.vector_store %arg8[%c0_30, %c1_31, %c55], %29 {strides = array<i32>} : memref<1x18x128xf32, #tpu.memory_space<vmem>>, vector<1x16x16xf32>,
    %c0_32 = arith.constant 0 : index
    %c1_33 = arith.constant 1 : index
    %c73 = arith.constant 73 : index
    %30 = vector.load %arg8[%c0_32, %c1_33, %c73] : memref<1x18x128xf32, #tpu.memory_space<vmem>>, vector<1x16x16xf32>
    %31 = vector.shape_cast %30 : vector<1x16x16xf32> to vector<16x16xf32>
    %32 = vector.shape_cast %5 : vector<16x16xf32> to vector<1x16x16xf32>
    tpu.vector_store %arg8[%c0_32, %c1_33, %c73], %32 {strides = array<i32>} : memref<1x18x128xf32, #tpu.memory_space<vmem>>, vector<1x16x16xf32>,
    %c0_34 = arith.constant 0 : index
    %c1_35 = arith.constant 1 : index
    %c1_36 = arith.constant 1 : index
    %33 = vector.load %arg9[%c0_34, %c1_35, %c1_36] : memref<1x18x18xf32, #tpu.memory_space<vmem>>, vector<1x16x16xf32>
    %34 = vector.shape_cast %33 : vector<1x16x16xf32> to vector<16x16xf32>
    %35 = vector.shape_cast %5 : vector<16x16xf32> to vector<1x16x16xf32>
    tpu.vector_store %arg9[%c0_34, %c1_35, %c1_36], %35 {strides = array<i32>} : memref<1x18x18xf32, #tpu.memory_space<vmem>>, vector<1x16x16xf32>,
    %cst_37 = arith.constant 0.000000e+00 : f32
    %36 = vector.broadcast %cst_37 : f32 to vector<1x128xf32>
    %cst_38 = arith.constant 0.000000e+00 : f32
    %37 = vector.broadcast %cst_38 : f32 to vector<1x128xf32>
    %cst_39 = arith.constant 0.000000e+00 : f32
    %38 = vector.broadcast %cst_39 : f32 to vector<16x256xf32>
    %c0_40 = arith.constant 0 : index
    %c0_41 = arith.constant 0 : index
    %c0_42 = arith.constant 0 : index
    %39 = vector.load %arg8[%c0_40, %c0_41, %c0_42] : memref<1x18x128xf32, #tpu.memory_space<vmem>>, vector<1x16x128xf32>
    %40 = vector.shape_cast %39 : vector<1x16x128xf32> to vector<16x128xf32>
    %41 = arith.truncf %40 : vector<16x128xf32> to vector<16x128xbf16>
    %c0_43 = arith.constant 0 : index
    %c0_44 = arith.constant 0 : index
    %c0_45 = arith.constant 0 : index
    %42 = vector.load %arg3[%c0_43, %c0_44, %c0_45] : memref<3x128x256xbf16, #tpu.memory_space<vmem>>, vector<1x128x256xbf16>
    %43 = vector.shape_cast %42 : vector<1x128x256xbf16> to vector<128x256xbf16>
    %cst_46 = arith.constant dense<0.000000e+00> : vector<16x256xf32>
    %44 = tpu.matmul %41, %43, %cst_46 {dimension_numbers = #tpu.dot_dimension_numbers<[1], [0], [0], [1], [0, 0, 1, 1], [], []>} : vector<16x128xbf16>, vector<128x256xbf16>, vector<16x256xf32> -> vector<16x256xf32>
    %45 = arith.addf %38, %44 : vector<16x256xf32>
    %c0_47 = arith.constant 0 : index
    %c1_48 = arith.constant 1 : index
    %c0_49 = arith.constant 0 : index
    %46 = vector.load %arg8[%c0_47, %c1_48, %c0_49] : memref<1x18x128xf32, #tpu.memory_space<vmem>>, vector<1x16x128xf32>
    %47 = vector.shape_cast %46 : vector<1x16x128xf32> to vector<16x128xf32>
    %48 = arith.truncf %47 : vector<16x128xf32> to vector<16x128xbf16>
    %c1_50 = arith.constant 1 : index
    %c0_51 = arith.constant 0 : index
    %c0_52 = arith.constant 0 : index
    %49 = vector.load %arg3[%c1_50, %c0_51, %c0_52] : memref<3x128x256xbf16, #tpu.memory_space<vmem>>, vector<1x128x256xbf16>
    %50 = vector.shape_cast %49 : vector<1x128x256xbf16> to vector<128x256xbf16>
    %cst_53 = arith.constant dense<0.000000e+00> : vector<16x256xf32>
    %51 = tpu.matmul %48, %50, %cst_53 {dimension_numbers = #tpu.dot_dimension_numbers<[1], [0], [0], [1], [0, 0, 1, 1], [], []>} : vector<16x128xbf16>, vector<128x256xbf16>, vector<16x256xf32> -> vector<16x256xf32>
    %52 = arith.addf %45, %51 : vector<16x256xf32>
    %c0_54 = arith.constant 0 : index
    %c2_55 = arith.constant 2 : index
    %c0_56 = arith.constant 0 : index
    %53 = vector.load %arg8[%c0_54, %c2_55, %c0_56] : memref<1x18x128xf32, #tpu.memory_space<vmem>>, vector<1x16x128xf32>
    %54 = vector.shape_cast %53 : vector<1x16x128xf32> to vector<16x128xf32>
    %55 = arith.truncf %54 : vector<16x128xf32> to vector<16x128xbf16>
    %c2_57 = arith.constant 2 : index
    %c0_58 = arith.constant 0 : index
    %c0_59 = arith.constant 0 : index
    %56 = vector.load %arg3[%c2_57, %c0_58, %c0_59] : memref<3x128x256xbf16, #tpu.memory_space<vmem>>, vector<1x128x256xbf16>
    %57 = vector.shape_cast %56 : vector<1x128x256xbf16> to vector<128x256xbf16>
    %cst_60 = arith.constant dense<0.000000e+00> : vector<16x256xf32>
    %58 = tpu.matmul %55, %57, %cst_60 {dimension_numbers = #tpu.dot_dimension_numbers<[1], [0], [0], [1], [0, 0, 1, 1], [], []>} : vector<16x128xbf16>, vector<128x256xbf16>, vector<16x256xf32> -> vector<16x256xf32>
    %59 = arith.addf %52, %58 : vector<16x256xf32>
    %60 = vector.extract_strided_slice %59 {offsets = [0, 0], sizes = [16, 128], strides = [1, 1]} : vector<16x256xf32> to vector<16x128xf32>
    %61 = vector.extract_strided_slice %59 {offsets = [0, 128], sizes = [16, 128], strides = [1, 1]} : vector<16x256xf32> to vector<16x128xf32>
    %cst_61 = arith.constant 9.99999993E-9 : f32
    %62 = vector.broadcast %cst_61 : f32 to vector<16x128xf32>
    %63 = arith.addf %61, %62 : vector<16x128xf32>
    %64 = tpu.reciprocal %63 {approx = true} : vector<16x128xf32> -> vector<16x128xf32>
    %65 = arith.mulf %60, %64 : vector<16x128xf32>
    %c0_62 = arith.constant 0 : index
    %c0_63 = arith.constant 0 : index
    %66 = vector.load %arg4[%c0_62, %c0_63] : memref<1x128xf32, #tpu.memory_space<vmem>>, vector<1x128xf32>
    %67 = vector.broadcast %66 : vector<1x128xf32> to vector<16x128xf32>
    %68 = arith.addf %65, %67 : vector<16x128xf32>
    %69 = arith.truncf %68 : vector<16x128xf32> to vector<16x128xbf16>
    %c0_64 = arith.constant 0 : index
    %c0_65 = arith.constant 0 : index
    %c0_66 = arith.constant 0 : index
    %70 = vector.load %arg5[%c0_64, %c0_65, %c0_66] : memref<1x16x128xbf16, #tpu.memory_space<vmem>>, vector<1x16x128xbf16>
    %71 = vector.shape_cast %70 : vector<1x16x128xbf16> to vector<16x128xbf16>
    %72 = vector.shape_cast %69 : vector<16x128xbf16> to vector<1x16x128xbf16>
    tpu.vector_store %arg5[%c0_64, %c0_65, %c0_66], %72 {strides = array<i32>} : memref<1x16x128xbf16, #tpu.memory_space<vmem>>, vector<1x16x128xbf16>,
    %cst_67 = arith.constant dense<0.000000e+00> : vector<128xf32>
    %73 = vector.multi_reduction <add>, %68, %cst_67 [0] : vector<16x128xf32> to vector<128xf32>
    %74 = vector.shape_cast %73 : vector<128xf32> to vector<1x128xf32>
    %75 = arith.addf %36, %74 : vector<1x128xf32>
    %76 = arith.mulf %68, %68 : vector<16x128xf32>
    %cst_68 = arith.constant dense<0.000000e+00> : vector<128xf32>
    %77 = vector.multi_reduction <add>, %76, %cst_68 [0] : vector<16x128xf32> to vector<128xf32>
    %78 = vector.shape_cast %77 : vector<128xf32> to vector<1x128xf32>
    %79 = arith.addf %37, %78 : vector<1x128xf32>
    %c0_69 = arith.constant 0 : index
    %c0_70 = arith.constant 0 : index
    %c0_71 = arith.constant 0 : index
    %80 = vector.load %arg9[%c0_69, %c0_70, %c0_71] : memref<1x18x18xf32, #tpu.memory_space<vmem>>, vector<1x16x16xf32>
    %81 = vector.shape_cast %80 : vector<1x16x16xf32> to vector<16x16xf32>
    %c0_72 = arith.constant 0 : index
    %c0_73 = arith.constant 0 : index
    %c1_74 = arith.constant 1 : index
    %82 = vector.load %arg9[%c0_72, %c0_73, %c1_74] : memref<1x18x18xf32, #tpu.memory_space<vmem>>, vector<1x16x16xf32>
    %83 = vector.shape_cast %82 : vector<1x16x16xf32> to vector<16x16xf32>
    %84 = arith.maximumf %81, %83 : vector<16x16xf32>
    %c0_75 = arith.constant 0 : index
    %c0_76 = arith.constant 0 : index
    %c2_77 = arith.constant 2 : index
    %85 = vector.load %arg9[%c0_75, %c0_76, %c2_77] : memref<1x18x18xf32, #tpu.memory_space<vmem>>, vector<1x16x16xf32>
    %86 = vector.shape_cast %85 : vector<1x16x16xf32> to vector<16x16xf32>
    %87 = arith.maximumf %84, %86 : vector<16x16xf32>
    %c0_78 = arith.constant 0 : index
    %c1_79 = arith.constant 1 : index
    %c0_80 = arith.constant 0 : index
    %88 = vector.load %arg9[%c0_78, %c1_79, %c0_80] : memref<1x18x18xf32, #tpu.memory_space<vmem>>, vector<1x16x16xf32>
    %89 = vector.shape_cast %88 : vector<1x16x16xf32> to vector<16x16xf32>
    %90 = arith.maximumf %87, %89 : vector<16x16xf32>
    %c0_81 = arith.constant 0 : index
    %c1_82 = arith.constant 1 : index
    %c1_83 = arith.constant 1 : index
    %91 = vector.load %arg9[%c0_81, %c1_82, %c1_83] : memref<1x18x18xf32, #tpu.memory_space<vmem>>, vector<1x16x16xf32>
    %92 = vector.shape_cast %91 : vector<1x16x16xf32> to vector<16x16xf32>
    %93 = arith.maximumf %90, %92 : vector<16x16xf32>
    %c0_84 = arith.constant 0 : index
    %c1_85 = arith.constant 1 : index
    %c2_86 = arith.constant 2 : index
    %94 = vector.load %arg9[%c0_84, %c1_85, %c2_86] : memref<1x18x18xf32, #tpu.memory_space<vmem>>, vector<1x16x16xf32>
    %95 = vector.shape_cast %94 : vector<1x16x16xf32> to vector<16x16xf32>
    %96 = arith.maximumf %93, %95 : vector<16x16xf32>
    %c0_87 = arith.constant 0 : index
    %c2_88 = arith.constant 2 : index
    %c0_89 = arith.constant 0 : index
    %97 = vector.load %arg9[%c0_87, %c2_88, %c0_89] : memref<1x18x18xf32, #tpu.memory_space<vmem>>, vector<1x16x16xf32>
    %98 = vector.shape_cast %97 : vector<1x16x16xf32> to vector<16x16xf32>
    %99 = arith.maximumf %96, %98 : vector<16x16xf32>
    %c0_90 = arith.constant 0 : index
    %c2_91 = arith.constant 2 : index
    %c1_92 = arith.constant 1 : index
    %100 = vector.load %arg9[%c0_90, %c2_91, %c1_92] : memref<1x18x18xf32, #tpu.memory_space<vmem>>, vector<1x16x16xf32>
    %101 = vector.shape_cast %100 : vector<1x16x16xf32> to vector<16x16xf32>
    %102 = arith.maximumf %99, %101 : vector<16x16xf32>
    %c0_93 = arith.constant 0 : index
    %c2_94 = arith.constant 2 : index
    %c2_95 = arith.constant 2 : index
    %103 = vector.load %arg9[%c0_93, %c2_94, %c2_95] : memref<1x18x18xf32, #tpu.memory_space<vmem>>, vector<1x16x16xf32>
    %104 = vector.shape_cast %103 : vector<1x16x16xf32> to vector<16x16xf32>
    %105 = arith.maximumf %102, %104 : vector<16x16xf32>
    %c0_96 = arith.constant 0 : index
    %c0_97 = arith.constant 0 : index
    %c0_98 = arith.constant 0 : index
    %106 = vector.load %arg6[%c0_96, %c0_97, %c0_98] : memref<1x16x16xf32, #tpu.memory_space<vmem>>, vector<1x16x16xf32>
    %107 = vector.shape_cast %106 : vector<1x16x16xf32> to vector<16x16xf32>
    %108 = vector.shape_cast %105 : vector<16x16xf32> to vector<1x16x16xf32>
    tpu.vector_store %arg6[%c0_96, %c0_97, %c0_98], %108 {strides = array<i32>} : memref<1x16x16xf32, #tpu.memory_space<vmem>>, vector<1x16x16xf32>,
    %109 = tpu.concatenate %75, %79 in 0 : vector<1x128xf32>, vector<1x128xf32> -> vector<2x128xf32>
    %110 = vector.shape_cast %109 : vector<2x128xf32> to vector<1x2x128xf32>
    %c0_99 = arith.constant 0 : index
    %c0_100 = arith.constant 0 : index
    %c0_101 = arith.constant 0 : index
    %111 = vector.load %arg7[%c0_99, %c0_100, %c0_101] : memref<1x2x128xf32, #tpu.memory_space<vmem>>, vector<1x2x128xf32>
    tpu.vector_store %arg7[%c0_99, %c0_100, %c0_101], %110 {strides = array<i32>} : memref<1x2x128xf32, #tpu.memory_space<vmem>>, vector<1x2x128xf32>,
    return
  }
  func.func @transform_0(%arg0: i32) -> (i32, i32, i32, i32) {
    %c0_i32 = arith.constant 0 : i32
    %c0_i32_0 = arith.constant 0 : i32
    %c0_i32_1 = arith.constant 0 : i32
    %c0_i32_2 = arith.constant 0 : i32
    return %arg0, %c0_i32, %c0_i32_0, %c0_i32_1 : i32, i32, i32, i32
  }
  func.func @transform_1(%arg0: i32) -> (i32, i32, i32, i32) {
    %c0_i32 = arith.constant 0 : i32
    %c0_i32_0 = arith.constant 0 : i32
    %c0_i32_1 = arith.constant 0 : i32
    %c0_i32_2 = arith.constant 0 : i32
    return %arg0, %c0_i32, %c0_i32_0, %c0_i32_1 : i32, i32, i32, i32
  }
  func.func @transform_2(%arg0: i32) -> (i32, i32, i32) {
    %c0_i32 = arith.constant 0 : i32
    %c0_i32_0 = arith.constant 0 : i32
    %c0_i32_1 = arith.constant 0 : i32
    %c0_i32_2 = arith.constant 0 : i32
    return %c0_i32, %c0_i32_0, %c0_i32_1 : i32, i32, i32
  }
  func.func @transform_3(%arg0: i32) -> (i32, i32) {
    %c0_i32 = arith.constant 0 : i32
    %c0_i32_0 = arith.constant 0 : i32
    %c0_i32_1 = arith.constant 0 : i32
    return %c0_i32, %c0_i32_0 : i32, i32
  }
  func.func @transform_4(%arg0: i32) -> (i32, i32, i32) {
    %c0_i32 = arith.constant 0 : i32
    %c0_i32_0 = arith.constant 0 : i32
    %c0_i32_1 = arith.constant 0 : i32
    return %arg0, %c0_i32, %c0_i32_0 : i32, i32, i32
  }
  func.func @transform_5(%arg0: i32) -> (i32, i32, i32) {
    %c0_i32 = arith.constant 0 : i32
    %c0_i32_0 = arith.constant 0 : i32
    %c0_i32_1 = arith.constant 0 : i32
    return %arg0, %c0_i32, %c0_i32_0 : i32, i32, i32
  }
  func.func @transform_6(%arg0: i32) -> (i32, i32, i32) {
    %c0_i32 = arith.constant 0 : i32
    %c0_i32_0 = arith.constant 0 : i32
    %c0_i32_1 = arith.constant 0 : i32
    return %arg0, %c0_i32, %c0_i32_0 : i32, i32, i32
  }
}

</mosaic_0001>

<llo_original>
// kernel: tpu_custom_call.1
$region0: #{tpu_custom_call.1}
  #allocation0 [shape = 'u32[]', space=smem, size = 0x4, offset = 0x4, fixed_abs, tag = 'smem constant byte address 0x4 - core index']
  #allocation1 [shape = 'u32[144,128]{1,0:T(1,128)}', space=vmem, size = 0x12000, scoped, tag = 'internal scratch']
  #allocation2 [shape = 'f32[1,18,128]{2,1,0:T(8,128)}', space=vmem, size = 0x3000, scoped, tag = 'scratch operand']
  #allocation3 [shape = 'f32[1,18,18]{2,1,0:T(8,128)}', space=vmem, size = 0x3000, scoped, tag = 'scratch operand']
  %s0 = inlined_call_operand.hbm [shape: f32[2,4,16,16], index: 0, kind: input, shape index: {}]
  %s1 = inlined_call_operand.hbm [shape: f32[2,1,16,16], index: 1, kind: input, shape index: {}]
  %s2 = inlined_call_operand.hbm [shape: bf16[3,128,256], index: 2, kind: input, shape index: {}]
  %s3 = inlined_call_operand.vmem [shape: f32[1,128], index: 3, kind: input, shape index: {}]
  %s4 = inlined_call_operand.hbm [shape: bf16[2,16,128], index: 4, kind: output, shape index: {0}]
  %s5 = inlined_call_operand.hbm [shape: f32[2,16,16], index: 5, kind: output, shape index: {1}]
  %s6 = inlined_call_operand.hbm [shape: f32[2,2,128], index: 6, kind: output, shape index: {2}]
  %7 = xla_tuple %s4, %s5, %s6
  %s8 = sld [smem:[#allocation0]]
  $region77: #{tpu_custom_call.1} parent=0
    _
  %s10 = ssub.s32 1, %s8
  %s11 = scalar_select 0, %s10, %s8
  $region1: #{tpu_custom_call.1} parent=0
    #allocation4 [shape = 'u8[65536]{0}', space=vmem, size = 0x10000, scoped, tag = 'input window, operand 0']
    #allocation5 [shape = 's32[2]{0}', space=sflag, size = 0x8, scoped, tag = 'scoped memory for tpu_custom_call.1']
    #allocation6 [shape = 's32[2]{0}', space=sflag, size = 0x8, scoped, tag = 'scoped memory for tpu_custom_call.1']
    #allocation7 [shape = 'u8[16384]{0}', space=vmem, size = 0x4000, scoped, tag = 'input window, operand 1']
    #allocation8 [shape = 's32[2]{0}', space=sflag, size = 0x8, scoped, tag = 'scoped memory for tpu_custom_call.1']
    #allocation9 [shape = 'u8[196608]{0}', space=vmem, size = 0x30000, scoped, tag = 'input window, operand 2, single buffered']
    #allocation10 [shape = 'u8[8192]{0}', space=vmem, size = 0x2000, scoped, tag = 'output window, operand 0']
    #allocation11 [shape = 'u8[16384]{0}', space=vmem, size = 0x4000, scoped, tag = 'output window, operand 1']
    #allocation12 [shape = 's32[2]{0}', space=sflag, size = 0x8, scoped, tag = 'scoped memory for tpu_custom_call.1']
    #allocation13 [shape = 'u8[2048]{0}', space=vmem, size = 0x800, scoped, tag = 'output window, operand 2']
    %12 = vsyncpa [#allocation5], 0
    %s13 = scalar_lea.sflag [#allocation5], 1
    %14 = vsyncpa %s13, 0
    %15 = vsyncpa [#allocation8], 0
    %s16 = scalar_lea.sflag [#allocation8], 1
    %17 = vsyncpa %s16, 0
    %18 = vsyncpa [#allocation6], 0
    %s19 = scalar_lea.sflag [#allocation6], 1
    %20 = vsyncpa %s19, 0
    %21 = vsyncpa [#allocation12], 0
    %s22 = scalar_lea.sflag [#allocation12], 1
    %23 = vsyncpa %s22, 0
    loop: start=0, step=1, limit=4
    $region2: #{tpu_custom_call.1} parent=1 // loop_pre_header
      _
    $region3: #{tpu_custom_call.1} parent=1 // loop_header
      %s25 = sphi 0, %s29
      %p26 = scmp.ge.s32.totalorder %s25, 4
      %s35 = sphi 0, %s37
      %s38 = sphi 0, %s35
      %s39 = sphi 0, %s38
      %s55 = sphi 0, %s39
      %s61 = sphi 0, %s63
      %s64 = sphi 0, %s61
      %s65 = sphi 0, %s64
      %s81 = sphi 0, %s65
      %s85 = sphi 0, %s85
      %s87 = sphi 0, %s85
      %s88 = sphi 0, %s87
      %s102 = sphi 0, %s88
      %s106 = sphi 0, %s106
      %s108 = sphi 0, %s106
      %s109 = sphi 0, %s108
      %s123 = sphi 0, %s109
      %s129 = sphi 0, %s131
      %s132 = sphi 0, %s129
      %s133 = sphi 0, %s132
      %s149 = sphi 0, %s133
      %s155 = sphi 0, %s157
      %s158 = sphi 0, %s155
      %s159 = sphi 0, %s158
      %s175 = sphi 0, %s159
      %s181 = sphi 0, %s183
      %s184 = sphi 0, %s181
      %s185 = sphi 0, %s184
      %s201 = sphi 0, %s185
    $region4: #{tpu_custom_call.1} parent=1 // loop_header_branch
      %28 = sbr.rel (%p26) target = $region8
    $region5: #{tpu_custom_call.1} parent=1 // loop_body
      %s30 = ssub.s32 %s25, 1
      %s31 = ssub.s32 %s25, 2
      %s32 = sadd.s32 %s25, 1
      %s33 = ssub.s32 %s25, %s32
      %p34 = scmp.eq.s32.totalorder %s33, 0
      %s36 = sadd.s32 %s35, 1
      %s37 = scalar_select %p34, %s35, %s36
      %p40 = pneg %p34
      %p41 = scmp.eq.s32.totalorder %s25, 1
      %p42 = por %p40, %p41
      %p43 = scmp.ne.s32.totalorder %s35, %s38
      %p44 = scmp.eq.s32.totalorder %s25, 0
      %p45 = por %p43, %p44
      %p46 = scmp.ne.s32.totalorder %s35, %s38
      %p47 = scmp.eq.s32.totalorder %s30, 1
      %p48 = por %p46, %p47
      %p49 = scmp.ne.s32.totalorder %s38, %s39
      %p50 = scmp.eq.s32.totalorder %s30, 0
      %p51 = por %p49, %p50
      %p52 = scmp.ne.s32.totalorder %s38, %s39
      %p53 = scmp.eq.s32.totalorder %s31, 1
      %p54 = por %p52, %p53
      %p56 = scmp.ne.s32.totalorder %s39, %s55
      %p57 = scmp.eq.s32.totalorder %s31, 0
      %p58 = por %p56, %p57
      %s59 = ssub.s32 %s25, %s32
      %p60 = scmp.eq.s32.totalorder %s59, 0
      %s62 = sadd.s32 %s61, 1
      %s63 = scalar_select %p60, %s61, %s62
      %p66 = pneg %p60
      %p67 = scmp.eq.s32.totalorder %s25, 1
      %p68 = por %p66, %p67
      %p69 = scmp.ne.s32.totalorder %s61, %s64
      %p70 = scmp.eq.s32.totalorder %s25, 0
      %p71 = por %p69, %p70
      %p72 = scmp.ne.s32.totalorder %s61, %s64
      %p73 = scmp.eq.s32.totalorder %s30, 1
      %p74 = por %p72, %p73
      %p75 = scmp.ne.s32.totalorder %s64, %s65
      %p76 = scmp.eq.s32.totalorder %s30, 0
      %p77 = por %p75, %p76
      %p78 = scmp.ne.s32.totalorder %s64, %s65
      %p79 = scmp.eq.s32.totalorder %s31, 1
      %p80 = por %p78, %p79
      %p82 = scmp.ne.s32.totalorder %s65, %s81
      %p83 = scmp.eq.s32.totalorder %s31, 0
      %p84 = por %p82, %p83
      %s86 = sadd.s32 %s85, 1
      %p89 = scmp.eq.s32.totalorder %s25, 1
      %p90 = scmp.ne.s32.totalorder %s85, %s87
      %p91 = scmp.eq.s32.totalorder %s25, 0
      %p92 = por %p90, %p91
      %p93 = scmp.ne.s32.totalorder %s85, %s87
      %p94 = scmp.eq.s32.totalorder %s30, 1
      %p95 = por %p93, %p94
      %p96 = scmp.ne.s32.totalorder %s87, %s88
      %p97 = scmp.eq.s32.totalorder %s30, 0
      %p98 = por %p96, %p97
      %p99 = scmp.ne.s32.totalorder %s87, %s88
      %p100 = scmp.eq.s32.totalorder %s31, 1
      %p101 = por %p99, %p100
      %p103 = scmp.ne.s32.totalorder %s88, %s102
      %p104 = scmp.eq.s32.totalorder %s31, 0
      %p105 = por %p103, %p104
      %s107 = sadd.s32 %s106, 1
      %p110 = scmp.eq.s32.totalorder %s25, 1
      %p111 = scmp.ne.s32.totalorder %s106, %s108
      %p112 = scmp.eq.s32.totalorder %s25, 0
      %p113 = por %p111, %p112
      %p114 = scmp.ne.s32.totalorder %s106, %s108
      %p115 = scmp.eq.s32.totalorder %s30, 1
      %p116 = por %p114, %p115
      %p117 = scmp.ne.s32.totalorder %s108, %s109
      %p118 = scmp.eq.s32.totalorder %s30, 0
      %p119 = por %p117, %p118
      %p120 = scmp.ne.s32.totalorder %s108, %s109
      %p121 = scmp.eq.s32.totalorder %s31, 1
      %p122 = por %p120, %p121
      %p124 = scmp.ne.s32.totalorder %s109, %s123
      %p125 = scmp.eq.s32.totalorder %s31, 0
      %p126 = por %p124, %p125
      %s127 = ssub.s32 %s25, %s32
      %p128 = scmp.eq.s32.totalorder %s127, 0
      %s130 = sadd.s32 %s129, 1
      %s131 = scalar_select %p128, %s129, %s130
      %p134 = pneg %p128
      %p135 = scmp.eq.s32.totalorder %s25, 1
      %p136 = por %p134, %p135
      %p137 = scmp.ne.s32.totalorder %s129, %s132
      %p138 = scmp.eq.s32.totalorder %s25, 0
      %p139 = por %p137, %p138
      %p140 = scmp.ne.s32.totalorder %s129, %s132
      %p141 = scmp.eq.s32.totalorder %s30, 1
      %p142 = por %p140, %p141
      %p143 = scmp.ne.s32.totalorder %s132, %s133
      %p144 = scmp.eq.s32.totalorder %s30, 0
      %p145 = por %p143, %p144
      %p146 = scmp.ne.s32.totalorder %s132, %s133
      %p147 = scmp.eq.s32.totalorder %s31, 1
      %p148 = por %p146, %p147
      %p150 = scmp.ne.s32.totalorder %s133, %s149
      %p151 = scmp.eq.s32.totalorder %s31, 0
      %p152 = por %p150, %p151
      %s153 = ssub.s32 %s25, %s32
      %p154 = scmp.eq.s32.totalorder %s153, 0
      %s156 = sadd.s32 %s155, 1
      %s157 = scalar_select %p154, %s155, %s156
      %p160 = pneg %p154
      %p161 = scmp.eq.s32.totalorder %s25, 1
      %p162 = por %p160, %p161
      %p163 = scmp.ne.s32.totalorder %s155, %s158
      %p164 = scmp.eq.s32.totalorder %s25, 0
      %p165 = por %p163, %p164
      %p166 = scmp.ne.s32.totalorder %s155, %s158
      %p167 = scmp.eq.s32.totalorder %s30, 1
      %p168 = por %p166, %p167
      %p169 = scmp.ne.s32.totalorder %s158, %s159
      %p170 = scmp.eq.s32.totalorder %s30, 0
      %p171 = por %p169, %p170
      %p172 = scmp.ne.s32.totalorder %s158, %s159
      %p173 = scmp.eq.s32.totalorder %s31, 1
      %p174 = por %p172, %p173
      %p176 = scmp.ne.s32.totalorder %s159, %s175
      %p177 = scmp.eq.s32.totalorder %s31, 0
      %p178 = por %p176, %p177
      %s179 = ssub.s32 %s25, %s32
      %p180 = scmp.eq.s32.totalorder %s179, 0
      %s182 = sadd.s32 %s181, 1
      %s183 = scalar_select %p180, %s181, %s182
      %p186 = pneg %p180
      %p187 = scmp.eq.s32.totalorder %s25, 1
      %p188 = por %p186, %p187
      %p189 = scmp.ne.s32.totalorder %s181, %s184
      %p190 = scmp.eq.s32.totalorder %s25, 0
      %p191 = por %p189, %p190
      %p192 = scmp.ne.s32.totalorder %s181, %s184
      %p193 = scmp.eq.s32.totalorder %s30, 1
      %p194 = por %p192, %p193
      %p195 = scmp.ne.s32.totalorder %s184, %s185
      %p196 = scmp.eq.s32.totalorder %s30, 0
      %p197 = por %p195, %p196
      %p198 = scmp.ne.s32.totalorder %s184, %s185
      %p199 = scmp.eq.s32.totalorder %s31, 1
      %p200 = por %p198, %p199
      %p202 = scmp.ne.s32.totalorder %s185, %s201
      %p203 = scmp.eq.s32.totalorder %s31, 0
      %p204 = por %p202, %p203
      %p205 = scmp.le.s32.totalorder 1, %s25
      %p206 = scmp.lt.s32.totalorder %s25, 3
      %p207 = pnand %p205, %p206
      %p208 = pneg %p207
      // Predicated region
      $region9: #{tpu_custom_call.1} parent=5 // pred_check
        _
      $region10: #{tpu_custom_call.1} parent=5 // pred_check_branch
        %210 = sbr.rel (%p207) target = $region12
      $region11: #{tpu_custom_call.1} parent=5 // pred_region
        %s211 = ssub.s32 %s25, 1
        // Predicated region
        $region13: #{tpu_custom_call.1} parent=11 // pred_check
          %p212 = pneg %p98
        $region14: #{tpu_custom_call.1} parent=11 // pred_check_branch
          %214 = sbr.rel (%p212) target = $region16
        $region15: #{tpu_custom_call.1} parent=11 // pred_region
          %s216 = ssub.s32 6144, 6144
          %217 = vsyncadd [#allocation8], %s216
          %s218 = sshll.u32 [#allocation9], 4
          %s219 = int_to_ptr.vmem [resolvable:$true] %s218
          %224 = dma.hbm_to_vmem [thread:$0]  %s2, 6144, %s219, [#allocation8], 128, 128, 8
        $region16: #{tpu_custom_call.1} parent=11 // pred_fallthru
          _
        // Predicated region
        $region17: #{tpu_custom_call.1} parent=11 // pred_check
          %p225 = pneg %p119
        $region18: #{tpu_custom_call.1} parent=11 // pred_check_branch
          %227 = sbr.rel (%p225) target = $region20
        $region19: #{tpu_custom_call.1} parent=11 // pred_region
          _
        $region20: #{tpu_custom_call.1} parent=11 // pred_fallthru
          _
      $region12: #{tpu_custom_call.1} parent=5 // pred_fallthru
        _
      %p228 = scmp.lt.s32.totalorder %s25, 2
      // Predicated region
      $region21: #{tpu_custom_call.1} parent=5 // pred_check
        %p229 = pneg %p228
      $region22: #{tpu_custom_call.1} parent=5 // pred_check_branch
        %231 = sbr.rel (%p229) target = $region24
      $region23: #{tpu_custom_call.1} parent=5 // pred_region
        // Predicated region
        $region25: #{tpu_custom_call.1} parent=23 // pred_check
          %p232 = pneg %p45
        $region26: #{tpu_custom_call.1} parent=23 // pred_check_branch
          %234 = sbr.rel (%p232) target = $region28
        $region27: #{tpu_custom_call.1} parent=23 // pred_region
          %s235 = sand.u32 %s35, 1
          %s236 = scalar_lea.sflag [#allocation5], %s235
          %s237 = sand.u32 %s35, 1
          %s238 = smul.addr %s237, 64
          %s239 = scalar_lea.vmem [#allocation4], %s238
          %s241 = ssub.s32 1024, 1024
          %242 = vsyncadd %s236, %s241
          %s243 = smul.addr %s25, 8
          %s244 = smul.addr %s243, 128
          %s245 = scalar_lea.hbm %s0, %s244
          %s246 = sshll.u32 %s239, 4
          %s247 = int_to_ptr.vmem [resolvable:$true] %s246
          %252 = dma.hbm_to_vmem [thread:$0]  %s245, 1024, %s247, %s236, 128, 128, 8
        $region28: #{tpu_custom_call.1} parent=23 // pred_fallthru
          _
        // Predicated region
        $region29: #{tpu_custom_call.1} parent=23 // pred_check
          %p253 = pneg %p71
        $region30: #{tpu_custom_call.1} parent=23 // pred_check_branch
          %255 = sbr.rel (%p253) target = $region32
        $region31: #{tpu_custom_call.1} parent=23 // pred_region
          %s256 = sand.u32 %s25, 1
          %s257 = scalar_lea.sflag [#allocation8], %s256
          %s258 = sand.u32 %s61, 1
          %s259 = smul.addr %s258, 16
          %s260 = scalar_lea.vmem [#allocation7], %s259
          %s262 = ssub.s32 256, 256
          %263 = vsyncadd %s257, %s262
          %s264 = smul.addr %s25, 2
          %s265 = smul.addr %s264, 128
          %s266 = scalar_lea.hbm %s1, %s265
          %s267 = sshll.u32 %s260, 4
          %s268 = int_to_ptr.vmem [resolvable:$true] %s267
          %273 = dma.hbm_to_vmem [thread:$0]  %s266, 256, %s268, %s257, 128, 128, 8
        $region32: #{tpu_custom_call.1} parent=23 // pred_fallthru
          _
      $region24: #{tpu_custom_call.1} parent=5 // pred_fallthru
        _
      %p274 = scmp.le.s32.totalorder 1, %s25
      %p275 = scmp.lt.s32.totalorder %s25, 3
      %p276 = pnand %p274, %p275
      %p277 = pneg %p276
      // Predicated region
      $region33: #{tpu_custom_call.1} parent=5 // pred_check
        _
      $region34: #{tpu_custom_call.1} parent=5 // pred_check_branch
        %279 = sbr.rel (%p276) target = $region36
      $region35: #{tpu_custom_call.1} parent=5 // pred_region
        %s280 = ssub.s32 %s25, 1
        %s281 = sand.u32 %s38, 1
        %s282 = scalar_lea.sflag [#allocation5], %s281
        %s283 = sand.u32 %s38, 1
        %s284 = smul.addr %s283, 64
        %s285 = scalar_lea.vmem [#allocation4], %s284
        // Predicated region
        $region37: #{tpu_custom_call.1} parent=35 // pred_check
          %p286 = pneg %p51
        $region38: #{tpu_custom_call.1} parent=35 // pred_check_branch
          %288 = sbr.rel (%p286) target = $region40
        $region39: #{tpu_custom_call.1} parent=35 // pred_region
          %289 = dma.done %s282, 1024
        $region40: #{tpu_custom_call.1} parent=35 // pred_fallthru
          _
        %s290 = sand.u32 %s30, 1
        %s291 = scalar_lea.sflag [#allocation8], %s290
        %s292 = sand.u32 %s64, 1
        %s293 = smul.addr %s292, 16
        %s294 = scalar_lea.vmem [#allocation7], %s293
        // Predicated region
        $region41: #{tpu_custom_call.1} parent=35 // pred_check
          %p295 = pneg %p77
        $region42: #{tpu_custom_call.1} parent=35 // pred_check_branch
          %297 = sbr.rel (%p295) target = $region44
        $region43: #{tpu_custom_call.1} parent=35 // pred_region
          %298 = dma.done %s291, 256
        $region44: #{tpu_custom_call.1} parent=35 // pred_fallthru
          _
        // Predicated region
        $region45: #{tpu_custom_call.1} parent=35 // pred_check
          %p299 = pneg %p98
        $region46: #{tpu_custom_call.1} parent=35 // pred_check_branch
          %301 = sbr.rel (%p299) target = $region48
        $region47: #{tpu_custom_call.1} parent=35 // pred_region
          %302 = dma.done [#allocation8], 6144
        $region48: #{tpu_custom_call.1} parent=35 // pred_fallthru
          _
        %s303 = sand.u32 %s38, 1
        %s304 = scalar_lea.sflag [#allocation5], %s303
        %s305 = sand.u32 %s38, 1
        %s306 = smul.addr %s305, 64
        %s307 = scalar_lea.vmem [#allocation4], %s306
        %p308 = pneg %p51
        %p309 = pneg %p48
        %s310 = sand.u32 %s30, 1
        %s311 = scalar_lea.sflag [#allocation8], %s310
        %s312 = sand.u32 %s64, 1
        %s313 = smul.addr %s312, 16
        %s314 = scalar_lea.vmem [#allocation7], %s313
        %p315 = pneg %p77
        %p316 = pneg %p74
        %p317 = pneg %p98
        %p318 = pneg %p95
        %p319 = pneg %p119
        %p320 = pneg %p116
        %p321 = pneg %p145
        %p322 = pneg %p142
        %s323 = sand.u32 %s132, 1
        %s324 = scalar_lea.sflag [#allocation6], %s323
        %s325 = sand.u32 %s132, 1
        %s326 = smul.addr %s325, 8
        %s327 = scalar_lea.vmem [#allocation10], %s326
        %p328 = pneg %p171
        %p329 = pneg %p168
        %s330 = sand.u32 %s30, 1
        %s331 = scalar_lea.sflag [#allocation12], %s330
        %s332 = sand.u32 %s158, 1
        %s333 = smul.addr %s332, 16
        %s334 = scalar_lea.vmem [#allocation11], %s333
        %p335 = pneg %p197
        %p336 = pneg %p194
        %s337 = sand.u32 %s30, 1
        %s338 = scalar_lea.sflag [#allocation12], %s337
        %s339 = sand.u32 %s184, 1
        %s340 = smul.addr %s339, 2
        %s341 = scalar_lea.vmem [#allocation13], %s340
        %343 = vst [vmem:[#allocation2] sm:$0xff] 0.0
        %344 = vst [vmem:[#allocation2 + $0x8] sm:$0xff] 0.0
        %345 = vst [vmem:[#allocation2 + $0x10] sm:$0x3] 0.0
        %vm346 = vcmask 146432
        %347 = vst.msk [vmem:[#allocation3] sm:$0xff] %vm346, 0.0
        %348 = vst.msk [vmem:[#allocation3 + $0x8] sm:$0xff] %vm346, 0.0
        %vm349 = vcmask 140288
        %350 = vst.msk [vmem:[#allocation3 + $0x10] sm:$0x3] %vm349, 0.0
        %v351 = vld [vmem:[%s294] sm:$0xff]
        %v352 = vld [vmem:[%s294 + $0x8] sm:$0xff]
        %v353 = vld [vmem:[%s285] sm:$0xff]
        %v354 = vld [vmem:[%s285 + $0x8] sm:$0xff]
        %v355 = vmul.f32 %v353, %v351
        %v356 = vmul.f32 %v354, %v352
        %359 = vrot.lane.b32.xlu0 %v355, 1
        %v360 = vpop.permute.xlu0 %359
        %361 = vrot.lane.b32.xlu0 %v356, 1
        %v362 = vpop.permute.xlu0 %361
        %vm365 = vcmask 138248
        %366 = vst.msk [vmem:[#allocation2 + $0x1] sm:$0xff] %vm365, %v360
        %367 = vst.msk [vmem:[#allocation2 + $0x9] sm:$0xff] %vm365, %v362
        %s368 = scalar_lea.vmem %s285, 16 [#allocation4]
        %v369 = vld [vmem:[%s368] sm:$0xff]
        %v370 = vld [vmem:[%s368 + $0x8] sm:$0xff]
        %v371 = vmul.f32 %v369, %v351
        %v372 = vmul.f32 %v370, %v352
        %375 = vrot.lane.b32.xlu0 %v371, 19
        %v376 = vpop.permute.xlu0 %375
        %377 = vrot.lane.b32.xlu0 %v372, 19
        %v378 = vpop.permute.xlu0 %377
        %vm381 = vcmask 285848
        %382 = vst.msk [vmem:[#allocation2 + $0x1] sm:$0xff] %vm381, %v376
        %383 = vst.msk [vmem:[#allocation2 + $0x9] sm:$0xff] %vm381, %v378
        %s384 = scalar_lea.vmem %s285, 32 [#allocation4]
        %v385 = vld [vmem:[%s384] sm:$0xff]
        %v386 = vld [vmem:[%s384 + $0x8] sm:$0xff]
        %v387 = vmul.f32 %v385, %v351
        %v388 = vmul.f32 %v386, %v352
        %391 = vrot.lane.b32.xlu0 %v387, 37
        %v392 = vpop.permute.xlu0 %391
        %393 = vrot.lane.b32.xlu0 %v388, 37
        %v394 = vpop.permute.xlu0 %393
        %vm397 = vcmask 433448
        %398 = vst.msk [vmem:[#allocation2 + $0x1] sm:$0xff] %vm397, %v392
        %399 = vst.msk [vmem:[#allocation2 + $0x9] sm:$0xff] %vm397, %v394
        %s400 = scalar_lea.vmem %s285, 48 [#allocation4]
        %v401 = vld [vmem:[%s400] sm:$0xff]
        %v402 = vld [vmem:[%s400 + $0x8] sm:$0xff]
        %v403 = vmul.f32 %v401, %v351
        %v404 = vmul.f32 %v402, %v352
        %407 = vrot.lane.b32.xlu0 %v403, 55
        %v408 = vpop.permute.xlu0 %407
        %409 = vrot.lane.b32.xlu0 %v404, 55
        %v410 = vpop.permute.xlu0 %409
        %vm413 = vcmask 581048
        %414 = vst.msk [vmem:[#allocation2 + $0x1] sm:$0xff] %vm413, %v408
        %415 = vst.msk [vmem:[#allocation2 + $0x9] sm:$0xff] %vm413, %v410
        %418 = vrot.lane.b32.xlu0 %v351, 73
        %v419 = vpop.permute.xlu0 %418
        %420 = vrot.lane.b32.xlu0 %v352, 73
        %v421 = vpop.permute.xlu0 %420
        %vm424 = vcmask 728648
        %425 = vst.msk [vmem:[#allocation2 + $0x1] sm:$0xff] %vm424, %v419
        %426 = vst.msk [vmem:[#allocation2 + $0x9] sm:$0xff] %vm424, %v421
        %427 = vrot.lane.b32.xlu0 %v351, 1
        %v428 = vpop.permute.xlu0 %427
        %429 = vrot.lane.b32.xlu0 %v352, 1
        %v430 = vpop.permute.xlu0 %429
        %433 = vst.msk [vmem:[#allocation3 + $0x1] sm:$0xff] %vm365, %v428
        %434 = vst.msk [vmem:[#allocation3 + $0x9] sm:$0xff] %vm365, %v430
        %v435 = vld [vmem:[#allocation2] sm:$0xff]
        %v436 = vld [vmem:[#allocation2 + $0x8] sm:$0xff]
        %v437 = vpack.c.bf16 %v436, %v435
        %v438 = vld [vmem:[#allocation9] sm:$0xff]
        %v439 = vld [vmem:[#allocation9 + $0x8] sm:$0xff]
        %v440 = vld [vmem:[#allocation9 + $0x10] sm:$0xff]
        %v441 = vld [vmem:[#allocation9 + $0x18] sm:$0xff]
        %v442 = vld [vmem:[#allocation9 + $0x20] sm:$0xff]
        %v443 = vld [vmem:[#allocation9 + $0x28] sm:$0xff]
        %v444 = vld [vmem:[#allocation9 + $0x30] sm:$0xff]
        %v445 = vld [vmem:[#allocation9 + $0x38] sm:$0xff]
        %v446 = vld [vmem:[#allocation9 + $0x40] sm:$0xff]
        %v447 = vld [vmem:[#allocation9 + $0x48] sm:$0xff]
        %v448 = vld [vmem:[#allocation9 + $0x50] sm:$0xff]
        %v449 = vld [vmem:[#allocation9 + $0x58] sm:$0xff]
        %v450 = vld [vmem:[#allocation9 + $0x60] sm:$0xff]
        %v451 = vld [vmem:[#allocation9 + $0x68] sm:$0xff]
        %v452 = vld [vmem:[#allocation9 + $0x70] sm:$0xff]
        %v453 = vld [vmem:[#allocation9 + $0x78] sm:$0xff]
        %v454 = vld [vmem:[#allocation2 + $0x1] sm:$0xff]
        %v455 = vld [vmem:[#allocation2 + $0x9] sm:$0xff]
        %v456 = vpack.c.bf16 %v455, %v454
        %s457 = scalar_lea.vmem [#allocation9], 128
        %v458 = vld [vmem:[%s457] sm:$0xff]
        %v459 = vld [vmem:[%s457 + $0x8] sm:$0xff]
        %v460 = vld [vmem:[%s457 + $0x10] sm:$0xff]
        %v461 = vld [vmem:[%s457 + $0x18] sm:$0xff]
        %v462 = vld [vmem:[%s457 + $0x20] sm:$0xff]
        %v463 = vld [vmem:[%s457 + $0x28] sm:$0xff]
        %v464 = vld [vmem:[%s457 + $0x30] sm:$0xff]
        %v465 = vld [vmem:[%s457 + $0x38] sm:$0xff]
        %v466 = vld [vmem:[%s457 + $0x40] sm:$0xff]
        %v467 = vld [vmem:[%s457 + $0x48] sm:$0xff]
        %v468 = vld [vmem:[%s457 + $0x50] sm:$0xff]
        %v469 = vld [vmem:[%s457 + $0x58] sm:$0xff]
        %v470 = vld [vmem:[%s457 + $0x60] sm:$0xff]
        %v471 = vld [vmem:[%s457 + $0x68] sm:$0xff]
        %v472 = vld [vmem:[%s457 + $0x70] sm:$0xff]
        %v473 = vld [vmem:[%s457 + $0x78] sm:$0xff]
        %v490 = vunpack.c.l.b16 %v458
        %v491 = vunpack.c.h.b16 %v458
        %v492 = vunpack.c.l.b16 %v459
        %v493 = vunpack.c.h.b16 %v459
        %v494 = vunpack.c.l.b16 %v460
        %v495 = vunpack.c.h.b16 %v460
        %v496 = vunpack.c.l.b16 %v461
        %v497 = vunpack.c.h.b16 %v461
        %v498 = vunpack.c.l.b16 %v462
        %v499 = vunpack.c.h.b16 %v462
        %v500 = vunpack.c.l.b16 %v463
        %v501 = vunpack.c.h.b16 %v463
        %v502 = vunpack.c.l.b16 %v464
        %v503 = vunpack.c.h.b16 %v464
        %v504 = vunpack.c.l.b16 %v465
        %v505 = vunpack.c.h.b16 %v465
        %v506 = vunpack.c.l.b16 %v466
        %v507 = vunpack.c.h.b16 %v466
        %v508 = vunpack.c.l.b16 %v467
        %v509 = vunpack.c.h.b16 %v467
        %v510 = vunpack.c.l.b16 %v468
        %v511 = vunpack.c.h.b16 %v468
        %v512 = vunpack.c.l.b16 %v469
        %v513 = vunpack.c.h.b16 %v469
        %v514 = vunpack.c.l.b16 %v470
        %v515 = vunpack.c.h.b16 %v470
        %v516 = vunpack.c.l.b16 %v471
        %v517 = vunpack.c.h.b16 %v471
        %v518 = vunpack.c.l.b16 %v472
        %v519 = vunpack.c.h.b16 %v472
        %v520 = vunpack.c.l.b16 %v473
        %v521 = vunpack.c.h.b16 %v473
        %v522 = vpack.c.b16 %v492, %v490
        %v523 = vpack.c.b16 %v493, %v491
        %v524 = vpack.c.b16 %v496, %v494
        %v525 = vpack.c.b16 %v497, %v495
        %v526 = vpack.c.b16 %v500, %v498
        %v527 = vpack.c.b16 %v501, %v499
        %v528 = vpack.c.b16 %v504, %v502
        %v529 = vpack.c.b16 %v505, %v503
        %v530 = vpack.c.b16 %v508, %v506
        %v531 = vpack.c.b16 %v509, %v507
        %v532 = vpack.c.b16 %v512, %v510
        %v533 = vpack.c.b16 %v513, %v511
        %v534 = vpack.c.b16 %v516, %v514
        %v535 = vpack.c.b16 %v517, %v515
        %v536 = vpack.c.b16 %v520, %v518
        %v537 = vpack.c.b16 %v521, %v519
        %554 = vmatprep.subr.bf16.mxu0 %v523
        %555 = vmatpush1.bf16.msra.mxu0 %v522
        %556 = vmatprep.subr.bf16.mxu0 %v525
        %557 = vmatpush1.bf16.msra.mxu0 %v524
        %558 = vmatprep.subr.bf16.mxu0 %v527
        %559 = vmatpush1.bf16.msra.mxu0 %v526
        %560 = vmatprep.subr.bf16.mxu0 %v529
        %561 = vmatpush1.bf16.msra.mxu0 %v528
        %562 = vmatprep.subr.bf16.mxu0 %v531
        %563 = vmatpush1.bf16.msra.mxu0 %v530
        %564 = vmatprep.subr.bf16.mxu0 %v533
        %565 = vmatpush1.bf16.msra.mxu0 %v532
        %566 = vmatprep.subr.bf16.mxu0 %v535
        %567 = vmatpush1.bf16.msra.mxu0 %v534
        %568 = vmatprep.subr.bf16.mxu0 %v537
        %569 = vmatpush1.bf16.msra.mxu0 %v536
        %570 = vmatprep.subr.bf16.mxu0 0
        %571 = vmatpush1.bf16.msra.mxu0 0
        %572 = vmatprep.subr.bf16.mxu0 0
        %573 = vmatpush1.bf16.msra.mxu0 0
        %574 = vmatprep.subr.bf16.mxu0 0
        %575 = vmatpush1.bf16.msra.mxu0 0
        %576 = vmatprep.subr.bf16.mxu0 0
        %577 = vmatpush1.bf16.msra.mxu0 0
        %578 = vmatprep.subr.bf16.mxu0 0
        %579 = vmatpush1.bf16.msra.mxu0 0
        %580 = vmatprep.subr.bf16.mxu0 0
        %581 = vmatpush1.bf16.msra.mxu0 0
        %582 = vmatprep.subr.bf16.mxu0 0
        %583 = vmatpush1.bf16.msra.mxu0 0
        %584 = vmatprep.subr.bf16.mxu0 0
        %585 = vmatpush1.bf16.msra.mxu0 0
        %586 = vmatprep.mubr.bf16.mxu0 0
        %587 = vmatmul.mubr.bf16.gmra.mrb[0].mxu0 %v456
        %v588 = vpop.f32.mrb[0].mxu0
        %v589 = vadd.f32 0.0, %v588
        %v590 = vpop.f32.mrb[0].mxu0
        %v591 = vadd.f32 0.0, %v590
        %v592 = vpop.f32.mrb[0].mxu0
        %v593 = vadd.f32 0.0, %v592
        %v594 = vpop.f32.mrb[0].mxu0
        %v595 = vadd.f32 0.0, %v594
        %596 = vdwg.mxu0
        %v613 = vunpack.c.l.b16 %v438
        %v614 = vunpack.c.h.b16 %v438
        %v615 = vunpack.c.l.b16 %v439
        %v616 = vunpack.c.h.b16 %v439
        %v617 = vunpack.c.l.b16 %v440
        %v618 = vunpack.c.h.b16 %v440
        %v619 = vunpack.c.l.b16 %v441
        %v620 = vunpack.c.h.b16 %v441
        %v621 = vunpack.c.l.b16 %v442
        %v622 = vunpack.c.h.b16 %v442
        %v623 = vunpack.c.l.b16 %v443
        %v624 = vunpack.c.h.b16 %v443
        %v625 = vunpack.c.l.b16 %v444
        %v626 = vunpack.c.h.b16 %v444
        %v627 = vunpack.c.l.b16 %v445
        %v628 = vunpack.c.h.b16 %v445
        %v629 = vunpack.c.l.b16 %v446
        %v630 = vunpack.c.h.b16 %v446
        %v631 = vunpack.c.l.b16 %v447
        %v632 = vunpack.c.h.b16 %v447
        %v633 = vunpack.c.l.b16 %v448
        %v634 = vunpack.c.h.b16 %v448
        %v635 = vunpack.c.l.b16 %v449
        %v636 = vunpack.c.h.b16 %v449
        %v637 = vunpack.c.l.b16 %v450
        %v638 = vunpack.c.h.b16 %v450
        %v639 = vunpack.c.l.b16 %v451
        %v640 = vunpack.c.h.b16 %v451
        %v641 = vunpack.c.l.b16 %v452
        %v642 = vunpack.c.h.b16 %v452
        %v643 = vunpack.c.l.b16 %v453
        %v644 = vunpack.c.h.b16 %v453
        %v645 = vpack.c.b16 %v615, %v613
        %v646 = vpack.c.b16 %v616, %v614
        %v647 = vpack.c.b16 %v619, %v617
        %v648 = vpack.c.b16 %v620, %v618
        %v649 = vpack.c.b16 %v623, %v621
        %v650 = vpack.c.b16 %v624, %v622
        %v651 = vpack.c.b16 %v627, %v625
        %v652 = vpack.c.b16 %v628, %v626
        %v653 = vpack.c.b16 %v631, %v629
        %v654 = vpack.c.b16 %v632, %v630
        %v655 = vpack.c.b16 %v635, %v633
        %v656 = vpack.c.b16 %v636, %v634
        %v657 = vpack.c.b16 %v639, %v637
        %v658 = vpack.c.b16 %v640, %v638
        %v659 = vpack.c.b16 %v643, %v641
        %v660 = vpack.c.b16 %v644, %v642
        %677 = vmatprep.subr.bf16.mxu0 %v646
        %678 = vmatpush1.bf16.msra.mxu0 %v645
        %679 = vmatprep.subr.bf16.mxu0 %v648
        %680 = vmatpush1.bf16.msra.mxu0 %v647
        %681 = vmatprep.subr.bf16.mxu0 %v650
        %682 = vmatpush1.bf16.msra.mxu0 %v649
        %683 = vmatprep.subr.bf16.mxu0 %v652
        %684 = vmatpush1.bf16.msra.mxu0 %v651
        %685 = vmatprep.subr.bf16.mxu0 %v654
        %686 = vmatpush1.bf16.msra.mxu0 %v653
        %687 = vmatprep.subr.bf16.mxu0 %v656
        %688 = vmatpush1.bf16.msra.mxu0 %v655
        %689 = vmatprep.subr.bf16.mxu0 %v658
        %690 = vmatpush1.bf16.msra.mxu0 %v657
        %691 = vmatprep.subr.bf16.mxu0 %v660
        %692 = vmatpush1.bf16.msra.mxu0 %v659
        %693 = vmatprep.subr.bf16.mxu0 0
        %694 = vmatpush1.bf16.msra.mxu0 0
        %695 = vmatprep.subr.bf16.mxu0 0
        %696 = vmatpush1.bf16.msra.mxu0 0
        %697 = vmatprep.subr.bf16.mxu0 0
        %698 = vmatpush1.bf16.msra.mxu0 0
        %699 = vmatprep.subr.bf16.mxu0 0
        %700 = vmatpush1.bf16.msra.mxu0 0
        %701 = vmatprep.subr.bf16.mxu0 0
        %702 = vmatpush1.bf16.msra.mxu0 0
        %703 = vmatprep.subr.bf16.mxu0 0
        %704 = vmatpush1.bf16.msra.mxu0 0
        %705 = vmatprep.subr.bf16.mxu0 0
        %706 = vmatpush1.bf16.msra.mxu0 0
        %707 = vmatprep.subr.bf16.mxu0 0
        %708 = vmatpush1.bf16.msra.mxu0 0
        %709 = vmatprep.mubr.bf16.mxu0 0
        %710 = vmatmul.mubr.bf16.gmra.mrb[0].mxu0 %v437
        %v711 = vpop.f32.mrb[0].mxu0
        %v712 = vadd.f32 %v589, %v711
        %v713 = vpop.f32.mrb[0].mxu0
        %v714 = vadd.f32 %v591, %v713
        %v715 = vpop.f32.mrb[0].mxu0
        %v716 = vadd.f32 %v593, %v715
        %v717 = vpop.f32.mrb[0].mxu0
        %v718 = vadd.f32 %v595, %v717
        %719 = vdwg.mxu0
        %v720 = vld [vmem:[#allocation2 + $0x2] sm:$0xff]
        %v721 = vld [vmem:[#allocation2 + $0xa] sm:$0xff]
        %v722 = vpack.c.bf16 %v721, %v720
        %s723 = scalar_lea.vmem [#allocation9], 256
        %v724 = vld [vmem:[%s723] sm:$0xff]
        %v725 = vld [vmem:[%s723 + $0x8] sm:$0xff]
        %v726 = vld [vmem:[%s723 + $0x10] sm:$0xff]
        %v727 = vld [vmem:[%s723 + $0x18] sm:$0xff]
        %v728 = vld [vmem:[%s723 + $0x20] sm:$0xff]
        %v729 = vld [vmem:[%s723 + $0x28] sm:$0xff]
        %v730 = vld [vmem:[%s723 + $0x30] sm:$0xff]
        %v731 = vld [vmem:[%s723 + $0x38] sm:$0xff]
        %v732 = vld [vmem:[%s723 + $0x40] sm:$0xff]
        %v733 = vld [vmem:[%s723 + $0x48] sm:$0xff]
        %v734 = vld [vmem:[%s723 + $0x50] sm:$0xff]
        %v735 = vld [vmem:[%s723 + $0x58] sm:$0xff]
        %v736 = vld [vmem:[%s723 + $0x60] sm:$0xff]
        %v737 = vld [vmem:[%s723 + $0x68] sm:$0xff]
        %v738 = vld [vmem:[%s723 + $0x70] sm:$0xff]
        %v739 = vld [vmem:[%s723 + $0x78] sm:$0xff]
        %v756 = vunpack.c.l.b16 %v724
        %v757 = vunpack.c.h.b16 %v724
        %v758 = vunpack.c.l.b16 %v725
        %v759 = vunpack.c.h.b16 %v725
        %v760 = vunpack.c.l.b16 %v726
        %v761 = vunpack.c.h.b16 %v726
        %v762 = vunpack.c.l.b16 %v727
        %v763 = vunpack.c.h.b16 %v727
        %v764 = vunpack.c.l.b16 %v728
        %v765 = vunpack.c.h.b16 %v728
        %v766 = vunpack.c.l.b16 %v729
        %v767 = vunpack.c.h.b16 %v729
        %v768 = vunpack.c.l.b16 %v730
        %v769 = vunpack.c.h.b16 %v730
        %v770 = vunpack.c.l.b16 %v731
        %v771 = vunpack.c.h.b16 %v731
        %v772 = vunpack.c.l.b16 %v732
        %v773 = vunpack.c.h.b16 %v732
        %v774 = vunpack.c.l.b16 %v733
        %v775 = vunpack.c.h.b16 %v733
        %v776 = vunpack.c.l.b16 %v734
        %v777 = vunpack.c.h.b16 %v734
        %v778 = vunpack.c.l.b16 %v735
        %v779 = vunpack.c.h.b16 %v735
        %v780 = vunpack.c.l.b16 %v736
        %v781 = vunpack.c.h.b16 %v736
        %v782 = vunpack.c.l.b16 %v737
        %v783 = vunpack.c.h.b16 %v737
        %v784 = vunpack.c.l.b16 %v738
        %v785 = vunpack.c.h.b16 %v738
        %v786 = vunpack.c.l.b16 %v739
        %v787 = vunpack.c.h.b16 %v739
        %v788 = vpack.c.b16 %v758, %v756
        %v789 = vpack.c.b16 %v759, %v757
        %v790 = vpack.c.b16 %v762, %v760
        %v791 = vpack.c.b16 %v763, %v761
        %v792 = vpack.c.b16 %v766, %v764
        %v793 = vpack.c.b16 %v767, %v765
        %v794 = vpack.c.b16 %v770, %v768
        %v795 = vpack.c.b16 %v771, %v769
        %v796 = vpack.c.b16 %v774, %v772
        %v797 = vpack.c.b16 %v775, %v773
        %v798 = vpack.c.b16 %v778, %v776
        %v799 = vpack.c.b16 %v779, %v777
        %v800 = vpack.c.b16 %v782, %v780
        %v801 = vpack.c.b16 %v783, %v781
        %v802 = vpack.c.b16 %v786, %v784
        %v803 = vpack.c.b16 %v787, %v785
        %820 = vmatprep.subr.bf16.mxu0 %v789
        %821 = vmatpush1.bf16.msra.mxu0 %v788
        %822 = vmatprep.subr.bf16.mxu0 %v791
        %823 = vmatpush1.bf16.msra.mxu0 %v790
        %824 = vmatprep.subr.bf16.mxu0 %v793
        %825 = vmatpush1.bf16.msra.mxu0 %v792
        %826 = vmatprep.subr.bf16.mxu0 %v795
        %827 = vmatpush1.bf16.msra.mxu0 %v794
        %828 = vmatprep.subr.bf16.mxu0 %v797
        %829 = vmatpush1.bf16.msra.mxu0 %v796
        %830 = vmatprep.subr.bf16.mxu0 %v799
        %831 = vmatpush1.bf16.msra.mxu0 %v798
        %832 = vmatprep.subr.bf16.mxu0 %v801
        %833 = vmatpush1.bf16.msra.mxu0 %v800
        %834 = vmatprep.subr.bf16.mxu0 %v803
        %835 = vmatpush1.bf16.msra.mxu0 %v802
        %836 = vmatprep.subr.bf16.mxu0 0
        %837 = vmatpush1.bf16.msra.mxu0 0
        %838 = vmatprep.subr.bf16.mxu0 0
        %839 = vmatpush1.bf16.msra.mxu0 0
        %840 = vmatprep.subr.bf16.mxu0 0
        %841 = vmatpush1.bf16.msra.mxu0 0
        %842 = vmatprep.subr.bf16.mxu0 0
        %843 = vmatpush1.bf16.msra.mxu0 0
        %844 = vmatprep.subr.bf16.mxu0 0
        %845 = vmatpush1.bf16.msra.mxu0 0
        %846 = vmatprep.subr.bf16.mxu0 0
        %847 = vmatpush1.bf16.msra.mxu0 0
        %848 = vmatprep.subr.bf16.mxu0 0
        %849 = vmatpush1.bf16.msra.mxu0 0
        %850 = vmatprep.subr.bf16.mxu0 0
        %851 = vmatpush1.bf16.msra.mxu0 0
        %852 = vmatprep.mubr.bf16.mxu0 0
        %853 = vmatmul.mubr.bf16.gmra.mrb[0].mxu0 %v722
        %v854 = vpop.f32.mrb[0].mxu0
        %v855 = vadd.f32 0.0, %v854
        %v856 = vpop.f32.mrb[0].mxu0
        %v857 = vadd.f32 0.0, %v856
        %v858 = vpop.f32.mrb[0].mxu0
        %v859 = vadd.f32 0.0, %v858
        %v860 = vpop.f32.mrb[0].mxu0
        %v861 = vadd.f32 0.0, %v860
        %862 = vdwg.mxu0
        %v863 = vadd.f32 %v712, %v855
        %v864 = vadd.f32 %v714, %v857
        %v865 = vadd.f32 %v716, %v859
        %v866 = vadd.f32 %v718, %v861
        %v867 = vadd.f32 %v864, 1e-08
        %v868 = vadd.f32 %v866, 1e-08
        %v869 = vrcp.pop %v867
        %v870 = vrcp.pop %v868
        %v871 = vmul.f32 %v863, %v869
        %v872 = vmul.f32 %v865, %v870
        %v873 = vld [vmem:[%s3] sm:$0x1]
        %v875 = vlaneseq
        %v876 = vshrl.u32 %v875, 7
        %v877 = vsub.s32 0, %v876
        %v878 = vrot.slane %v873, %v877
        %v880 = vadd.f32 %v871, %v878
        %v881 = vadd.f32 %v872, %v878
        %v882 = vpack.c.bf16 %v881, %v880
        %v884 = vunpack.c.l.b16 %v882
        %v885 = vunpack.c.h.b16 %v882
        %v886 = vpack.c.b16 %v884, %v884
        %v887 = vpack.c.b16 %v885, %v885
        %890 = vst [vmem:[%s327] sm:$0xf] %v886
        %891 = vst [vmem:[%s327 + $0x4] sm:$0xf] %v887
        %v892 = vadd.f32 %v880, %v881
        %v893 = vrot.slane %v892, 4
        %v894 = vadd.f32 %v892, %v893
        %v895 = vrot.slane %v894, 2
        %v896 = vadd.f32 %v894, %v895
        %v897 = vrot.slane %v896, 1
        %v898 = vadd.f32 %v896, %v897
        %v899 = vadd.f32 %v898, 0.0
        %v900 = vmul.f32 %v880, %v880
        %v901 = vmul.f32 %v881, %v881
        %v902 = vadd.f32 %v900, %v901
        %v903 = vrot.slane %v902, 4
        %v904 = vadd.f32 %v902, %v903
        %v905 = vrot.slane %v904, 2
        %v906 = vadd.f32 %v904, %v905
        %v907 = vrot.slane %v906, 1
        %v908 = vadd.f32 %v906, %v907
        %v909 = vadd.f32 %v908, 0.0
        %v910 = vld [vmem:[#allocation3] sm:$0xff]
        %v911 = vld [vmem:[#allocation3 + $0x8] sm:$0xff]
        %914 = vrot.lane.b32.xlu0 %v910, 127
        %v915 = vpop.permute.xlu0 %914
        %916 = vrot.lane.b32.xlu0 %v911, 127
        %v917 = vpop.permute.xlu0 %916
        %v920 = vmax.f32 %v910, %v915
        %v921 = vmax.f32 %v911, %v917
        %922 = vrot.lane.b32.xlu0 %v910, 126
        %v923 = vpop.permute.xlu0 %922
        %924 = vrot.lane.b32.xlu0 %v911, 126
        %v925 = vpop.permute.xlu0 %924
        %v928 = vmax.f32 %v920, %v923
        %v929 = vmax.f32 %v921, %v925
        %v930 = vld [vmem:[#allocation3 + $0x1] sm:$0xff]
        %v931 = vld [vmem:[#allocation3 + $0x9] sm:$0xff]
        %v932 = vmax.f32 %v928, %v930
        %v933 = vmax.f32 %v929, %v931
        %936 = vrot.lane.b32.xlu0 %v930, 127
        %v937 = vpop.permute.xlu0 %936
        %938 = vrot.lane.b32.xlu0 %v931, 127
        %v939 = vpop.permute.xlu0 %938
        %v942 = vmax.f32 %v932, %v937
        %v943 = vmax.f32 %v933, %v939
        %944 = vrot.lane.b32.xlu0 %v930, 126
        %v945 = vpop.permute.xlu0 %944
        %946 = vrot.lane.b32.xlu0 %v931, 126
        %v947 = vpop.permute.xlu0 %946
        %v950 = vmax.f32 %v942, %v945
        %v951 = vmax.f32 %v943, %v947
        %v952 = vld [vmem:[#allocation3 + $0x2] sm:$0xff]
        %v953 = vld [vmem:[#allocation3 + $0xa] sm:$0xff]
        %v954 = vmax.f32 %v950, %v952
        %v955 = vmax.f32 %v951, %v953
        %958 = vrot.lane.b32.xlu0 %v952, 127
        %v959 = vpop.permute.xlu0 %958
        %960 = vrot.lane.b32.xlu0 %v953, 127
        %v961 = vpop.permute.xlu0 %960
        %v964 = vmax.f32 %v954, %v959
        %v965 = vmax.f32 %v955, %v961
        %966 = vrot.lane.b32.xlu0 %v952, 126
        %v967 = vpop.permute.xlu0 %966
        %968 = vrot.lane.b32.xlu0 %v953, 126
        %v969 = vpop.permute.xlu0 %968
        %v972 = vmax.f32 %v964, %v967
        %v973 = vmax.f32 %v965, %v969
        %vm974 = vcmask 130048
        %975 = vst.msk [vmem:[%s334] sm:$0xff] %vm974, %v972
        %976 = vst.msk [vmem:[%s334 + $0x8] sm:$0xff] %vm974, %v973
        %vm977 = vcmask 1040384
        %v978 = vsel %vm977, %v899, %v909
        %979 = vst [vmem:[%s341] sm:$0x3] %v978
        %s980 = sand.u32 %s132, 1
        %s981 = scalar_lea.sflag [#allocation6], %s980
        %s982 = sand.u32 %s132, 1
        %s983 = smul.addr %s982, 8
        %s984 = scalar_lea.vmem [#allocation10], %s983
        %s985 = sand.u32 %s30, 1
        %s986 = scalar_lea.sflag [#allocation12], %s985
        %s987 = sand.u32 %s158, 1
        %s988 = smul.addr %s987, 16
        %s989 = scalar_lea.vmem [#allocation11], %s988
        %s990 = sand.u32 %s30, 1
        %s991 = scalar_lea.sflag [#allocation12], %s990
        %s992 = sand.u32 %s184, 1
        %s993 = smul.addr %s992, 2
        %s994 = scalar_lea.vmem [#allocation13], %s993
        // Predicated region
        $region49: #{tpu_custom_call.1} parent=35 // pred_check
          %p995 = pneg %p142
        $region50: #{tpu_custom_call.1} parent=35 // pred_check_branch
          %997 = sbr.rel (%p995) target = $region52
        $region51: #{tpu_custom_call.1} parent=35 // pred_region
          %s999 = ssub.s32 128, 128
          %1000 = vsyncadd %s981, %s999
          %s1001 = smul.addr %s30, 2
          %s1002 = smul.addr %s1001, 64
          %s1003 = scalar_lea.hbm %s4, %s1002
          %s1004 = sshll.u32 %s984, 4
          %s1005 = int_to_ptr.vmem [resolvable:$true] %s1004
          %1010 = dma.vmem_to_hbm [thread:$0]  %s1005, 128, %s1003, %s981, 64, 64, 4
        $region52: #{tpu_custom_call.1} parent=35 // pred_fallthru
          _
        // Predicated region
        $region53: #{tpu_custom_call.1} parent=35 // pred_check
          %p1011 = pneg %p168
        $region54: #{tpu_custom_call.1} parent=35 // pred_check_branch
          %1013 = sbr.rel (%p1011) target = $region56
        $region55: #{tpu_custom_call.1} parent=35 // pred_region
          %s1015 = ssub.s32 256, 256
          %1016 = vsyncadd %s986, %s1015
          %s1017 = smul.addr %s30, 2
          %s1018 = smul.addr %s1017, 128
          %s1019 = scalar_lea.hbm %s5, %s1018
          %s1020 = sshll.u32 %s989, 4
          %s1021 = int_to_ptr.vmem [resolvable:$true] %s1020
          %1026 = dma.vmem_to_hbm [thread:$0]  %s1021, 256, %s1019, %s986, 128, 128, 8
        $region56: #{tpu_custom_call.1} parent=35 // pred_fallthru
          _
        // Predicated region
        $region57: #{tpu_custom_call.1} parent=35 // pred_check
          %p1027 = pneg %p194
        $region58: #{tpu_custom_call.1} parent=35 // pred_check_branch
          %1029 = sbr.rel (%p1027) target = $region60
        $region59: #{tpu_custom_call.1} parent=35 // pred_region
          %s1031 = ssub.s32 32, 32
          %1032 = vsyncadd %s991, %s1031
          %s1033 = smul.addr %s30, 32
          %s1034 = scalar_lea.hbm %s6, %s1033
          %s1036 = sshll.u32 %s994, 4
          %s1037 = int_to_ptr.vmem [resolvable:$true] %s1036
          %1039 = dma.vmem_to_hbm [thread:$0]  %s1037, 32, %s1034, %s991
        $region60: #{tpu_custom_call.1} parent=35 // pred_fallthru
          _
      $region36: #{tpu_custom_call.1} parent=5 // pred_fallthru
        _
      %p1040 = scmp.le.s32.totalorder 2, %s25
      // Predicated region
      $region61: #{tpu_custom_call.1} parent=5 // pred_check
        %p1041 = pneg %p1040
      $region62: #{tpu_custom_call.1} parent=5 // pred_check_branch
        %1043 = sbr.rel (%p1041) target = $region64
      $region63: #{tpu_custom_call.1} parent=5 // pred_region
        %s1044 = ssub.s32 %s25, 2
        // Predicated region
        $region65: #{tpu_custom_call.1} parent=63 // pred_check
          %p1045 = pneg %p148
        $region66: #{tpu_custom_call.1} parent=63 // pred_check_branch
          %1047 = sbr.rel (%p1045) target = $region68
        $region67: #{tpu_custom_call.1} parent=63 // pred_region
          %s1048 = sand.u32 %s133, 1
          %s1049 = scalar_lea.sflag [#allocation6], %s1048
          %s1050 = sand.u32 %s133, 1
          %s1051 = smul.addr %s1050, 8
          %s1052 = scalar_lea.vmem [#allocation10], %s1051
          %1053 = dma.done %s1049, 128
        $region68: #{tpu_custom_call.1} parent=63 // pred_fallthru
          _
        // Predicated region
        $region69: #{tpu_custom_call.1} parent=63 // pred_check
          %p1054 = pneg %p174
        $region70: #{tpu_custom_call.1} parent=63 // pred_check_branch
          %1056 = sbr.rel (%p1054) target = $region72
        $region71: #{tpu_custom_call.1} parent=63 // pred_region
          %s1057 = sand.u32 %s31, 1
          %s1058 = scalar_lea.sflag [#allocation12], %s1057
          %s1059 = sand.u32 %s159, 1
          %s1060 = smul.addr %s1059, 16
          %s1061 = scalar_lea.vmem [#allocation11], %s1060
          %1062 = dma.done %s1058, 256
        $region72: #{tpu_custom_call.1} parent=63 // pred_fallthru
          _
        // Predicated region
        $region73: #{tpu_custom_call.1} parent=63 // pred_check
          %p1063 = pneg %p200
        $region74: #{tpu_custom_call.1} parent=63 // pred_check_branch
          %1065 = sbr.rel (%p1063) target = $region76
        $region75: #{tpu_custom_call.1} parent=63 // pred_region
          %s1066 = sand.u32 %s31, 1
          %s1067 = scalar_lea.sflag [#allocation12], %s1066
          %s1068 = sand.u32 %s185, 1
          %s1069 = smul.addr %s1068, 2
          %s1070 = scalar_lea.vmem [#allocation13], %s1069
          %1071 = dma.done %s1067, 32
        $region76: #{tpu_custom_call.1} parent=63 // pred_fallthru
          _
      $region64: #{tpu_custom_call.1} parent=5 // pred_fallthru
        _
    $region6: #{tpu_custom_call.1} parent=1 // loop_footer
      %s29 = sadd.s32 1, %s25
    $region7: #{tpu_custom_call.1} parent=1 // loop_footer_branch
      %24 = sbr.rel target = $region3
    $region8: #{tpu_custom_call.1} parent=1 // loop_exit
      _
    %1072 = vsyncpa [#allocation5], 1
    %s1073 = scalar_lea.sflag [#allocation5], 1
    %1074 = vsyncpa %s1073, 1
    %1075 = vsyncpa [#allocation8], 1
    %s1076 = scalar_lea.sflag [#allocation8], 1
    %1077 = vsyncpa %s1076, 1
    %1078 = vsyncpa [#allocation6], 1
    %s1079 = scalar_lea.sflag [#allocation6], 1
    %1080 = vsyncpa %s1079, 1
    %1081 = vsyncpa [#allocation12], 1
    %s1082 = scalar_lea.sflag [#allocation12], 1
    %1083 = vsyncpa %s1082, 1

</llo_original>
